<compile_context>
chip_gen: v5e
topology: v5e:2x2
jax: 0.10.0
libtpu: 0.0.40
codegen_flags: <defaults>
</compile_context>

<pallas_src>
import jax
import jax.numpy as jnp
from jax.experimental import pallas as pl
from jax.experimental.pallas import tpu as pltpu


def make_lstm_classifier_kernel(B, T, H):
    """Build the kernel with static (B, T, H) baked in via closure."""

    def kernel(x_ref, w_ih_ref, w_hh_ref, b_ref, w_fc_ref, b_fc_ref, out_ref):
        # ---- Hoisted input projection: one MXU call for all time steps. ----
        # x_ref: (B*T, I)  ->  xp: (B*T, 4H), bias folded in.
        xp = jnp.dot(x_ref[...], w_ih_ref[...],
                     preferred_element_type=jnp.float32) + b_ref[...]
        # Layout-compatible split of the sublane axis: (B*T, 4H) -> (B, T, 4H).
        xp = xp.reshape(B, T, 4 * H)

        w_hh = w_hh_ref[...]  # (H, 4H), loaded once

        # ---- Recurrence: fully unrolled static loop, h/c carried in vregs. ----
        h = jnp.zeros((B, H), jnp.float32)
        c = jnp.zeros((B, H), jnp.float32)
        for t in range(T):
            if t == 0:
                # h0 == 0 -> skip the recurrent matmul entirely.
                gates = xp[:, 0, :]
            else:
                gates = jnp.dot(h, w_hh,
                                preferred_element_type=jnp.float32) + xp[:, t, :]
            # PyTorch gate order: input, forget, cell, output.
            i_g = jax.nn.sigmoid(gates[:, 0 * H:1 * H])
            f_g = jax.nn.sigmoid(gates[:, 1 * H:2 * H])
            g_g = jnp.tanh(gates[:, 2 * H:3 * H])
            o_g = jax.nn.sigmoid(gates[:, 3 * H:4 * H])
            c = f_g * c + i_g * g_g
            h = o_g * jnp.tanh(c)

        # ---- FC + softmax on the final hidden state. ----
        logits = jnp.dot(h, w_fc_ref[...],
                         preferred_element_type=jnp.float32) + b_fc_ref[...]
        m = jnp.max(logits, axis=1, keepdims=True)
        e = jnp.exp(logits - m)
        out_ref[...] = (e / jnp.sum(e, axis=1, keepdims=True)).astype(out_ref.dtype)

    return kernel


def trajectory_classifier(x, params):
    """x: (B, T, I) batch_first, like the PyTorch module. Returns (B, C) probs."""
    w_ih, w_hh, bias, w_fc, b_fc = params
    B, T, I = x.shape
    H4 = w_ih.shape[1]
    H = H4 // 4
    C = w_fc.shape[1]

    # Free reshape (contiguous batch_first layout) — no HBM transpose.
    x2d = x.reshape(B * T, I)

    kernel = make_lstm_classifier_kernel(B, T, H)

    vmem_spec = pl.BlockSpec(memory_space=pltpu.MemorySpace.VMEM)
    return pl.pallas_call(
        kernel,
        out_shape=jax.ShapeDtypeStruct((B, C), jnp.float32),
        in_specs=[vmem_spec] * 6,   # whole arrays resident in VMEM; no grid
        out_specs=vmem_spec,
    )(x2d, w_ih, w_hh, bias, w_fc, b_fc)


def init_params(key, input_size, hidden_size, num_classes):
    """Deterministic init mirroring the PyTorch parameter shapes (U(-k, k), k=1/sqrt(H))."""
    k = 1.0 / jnp.sqrt(jnp.float32(hidden_size))
    keys = jax.random.split(key, 6)
    # PyTorch shapes: weight_ih_l0 (4H, I), weight_hh_l0 (4H, H), biases (4H,)
    w_ih_pt = jax.random.uniform(keys[0], (4 * hidden_size, input_size), jnp.float32, -k, k)
    w_hh_pt = jax.random.uniform(keys[1], (4 * hidden_size, hidden_size), jnp.float32, -k, k)
    b_ih = jax.random.uniform(keys[2], (4 * hidden_size,), jnp.float32, -k, k)
    b_hh = jax.random.uniform(keys[3], (4 * hidden_size,), jnp.float32, -k, k)
    # fc: weight (C, H), bias (C,)
    kf = 1.0 / jnp.sqrt(jnp.float32(hidden_size))
    w_fc_pt = jax.random.uniform(keys[4], (num_classes, hidden_size), jnp.float32, -kf, kf)
    b_fc = jax.random.uniform(keys[5], (num_classes,), jnp.float32, -kf, kf)

    # Transpose to right-multiply layout for the kernel.
    w_ih = w_ih_pt.T                      # (I, 4H)
    w_hh = w_hh_pt.T                      # (H, 4H)
    bias = (b_ih + b_hh)[None, :]         # (1, 4H)
    w_fc = w_fc_pt.T                      # (H, C)
    b_fc = b_fc[None, :]                  # (1, C)
    return w_ih, w_hh, bias, w_fc, b_fc


def reference_forward(x, params):
    """Pure-JAX reference reproducing nn.LSTM + Linear + softmax."""
    w_ih, w_hh, bias, w_fc, b_fc = params
    B = x.shape[0]
    H = w_hh.shape[0]

    def step(carry, x_t):
        h, c = carry
        gates = x_t @ w_ih + h @ w_hh + bias
        i_g = jax.nn.sigmoid(gates[:, 0 * H:1 * H])
        f_g = jax.nn.sigmoid(gates[:, 1 * H:2 * H])
        g_g = jnp.tanh(gates[:, 2 * H:3 * H])
        o_g = jax.nn.sigmoid(gates[:, 3 * H:4 * H])
        c = f_g * c + i_g * g_g
        h = o_g * jnp.tanh(c)
        return (h, c), None

    h0 = jnp.zeros((B, H), jnp.float32)
    c0 = jnp.zeros((B, H), jnp.float32)
    (h, _), _ = jax.lax.scan(step, (h0, c0), jnp.transpose(x, (1, 0, 2)))
    logits = h @ w_fc + b_fc
    return jax.nn.softmax(logits, axis=1)


if __name__ == "__main__":
    batch, seq_len = 2, 8
    input_size, hidden_size, num_classes = 16, 32, 8

    key = jax.random.PRNGKey(0)
    k_x, k_p = jax.random.split(key)
    x = jax.random.normal(k_x, (batch, seq_len, input_size), jnp.float32)
    params = init_params(k_p, input_size, hidden_size, num_classes)

    probs = trajectory_classifier(x, params)
    probs = jax.block_until_ready(probs)

    ref = reference_forward(x, params)
    assert probs.shape == (batch, num_classes)
    assert jnp.allclose(probs, ref, atol=1e-3, rtol=1e-3)
    assert jnp.allclose(jnp.sum(probs, axis=1), 1.0, atol=1e-4)

    print("KERNEL_OK")
</pallas_src>

<mosaic_0001>
module attributes {stable_mosaic.version = 11 : i64} {
  func.func @kernel(%arg0: memref<16x16xf32, #tpu.memory_space<vmem>>, %arg1: memref<16x128xf32, #tpu.memory_space<vmem>>, %arg2: memref<32x128xf32, #tpu.memory_space<vmem>>, %arg3: memref<1x128xf32, #tpu.memory_space<vmem>>, %arg4: memref<32x8xf32, #tpu.memory_space<vmem>>, %arg5: memref<1x8xf32, #tpu.memory_space<vmem>>, %arg6: memref<2x8xf32, #tpu.memory_space<vmem>>) attributes {dimension_semantics = [], scalar_prefetch = 0 : i64, scratch_operands = 0 : i64, tpu.core_type = #tpu.core_type<tc>} {
    %c0 = arith.constant 0 : index
    %c0_0 = arith.constant 0 : index
    %0 = vector.load %arg0[%c0, %c0_0] : memref<16x16xf32, #tpu.memory_space<vmem>>, vector<16x16xf32>
    %c0_1 = arith.constant 0 : index
    %c0_2 = arith.constant 0 : index
    %1 = vector.load %arg1[%c0_1, %c0_2] : memref<16x128xf32, #tpu.memory_space<vmem>>, vector<16x128xf32>
    %cst = arith.constant dense<0.000000e+00> : vector<16x128xf32>
    %2 = tpu.matmul %0, %1, %cst {dimension_numbers = #tpu.dot_dimension_numbers<[1], [0], [0], [1], [0, 0, 1, 1], [], []>} : vector<16x16xf32>, vector<16x128xf32>, vector<16x128xf32> -> vector<16x128xf32>
    %c0_3 = arith.constant 0 : index
    %c0_4 = arith.constant 0 : index
    %3 = vector.load %arg3[%c0_3, %c0_4] : memref<1x128xf32, #tpu.memory_space<vmem>>, vector<1x128xf32>
    %4 = vector.broadcast %3 : vector<1x128xf32> to vector<16x128xf32>
    %5 = arith.addf %2, %4 : vector<16x128xf32>
    %6 = vector.shape_cast %5 : vector<16x128xf32> to vector<2x8x128xf32>
    %c0_5 = arith.constant 0 : index
    %c0_6 = arith.constant 0 : index
    %7 = vector.load %arg2[%c0_5, %c0_6] : memref<32x128xf32, #tpu.memory_space<vmem>>, vector<32x128xf32>
    %cst_7 = arith.constant 0.000000e+00 : f32
    %8 = vector.broadcast %cst_7 : f32 to vector<2x32xf32>
    %9 = vector.extract_strided_slice %6 {offsets = [0, 0, 0], sizes = [2, 1, 128], strides = [1, 1, 1]} : vector<2x8x128xf32> to vector<2x1x128xf32>
    %10 = vector.shape_cast %9 : vector<2x1x128xf32> to vector<2x128xf32>
    %11 = vector.extract_strided_slice %10 {offsets = [0, 0], sizes = [2, 32], strides = [1, 1]} : vector<2x128xf32> to vector<2x32xf32>
    %12 = arith.negf %11 : vector<2x32xf32>
    %13 = math.exp %12 : vector<2x32xf32>
    %cst_8 = arith.constant 1.000000e+00 : f32
    %14 = vector.broadcast %cst_8 : f32 to vector<2x32xf32>
    %15 = arith.addf %14, %13 : vector<2x32xf32>
    %16 = arith.divf %14, %15 : vector<2x32xf32>
    %17 = vector.extract_strided_slice %10 {offsets = [0, 32], sizes = [2, 32], strides = [1, 1]} : vector<2x128xf32> to vector<2x32xf32>
    %18 = arith.negf %17 : vector<2x32xf32>
    %19 = math.exp %18 : vector<2x32xf32>
    %cst_9 = arith.constant 1.000000e+00 : f32
    %20 = vector.broadcast %cst_9 : f32 to vector<2x32xf32>
    %21 = arith.addf %20, %19 : vector<2x32xf32>
    %22 = arith.divf %20, %21 : vector<2x32xf32>
    %23 = vector.extract_strided_slice %10 {offsets = [0, 64], sizes = [2, 32], strides = [1, 1]} : vector<2x128xf32> to vector<2x32xf32>
    %24 = math.tanh %23 : vector<2x32xf32>
    %25 = vector.extract_strided_slice %10 {offsets = [0, 96], sizes = [2, 32], strides = [1, 1]} : vector<2x128xf32> to vector<2x32xf32>
    %26 = arith.negf %25 : vector<2x32xf32>
    %27 = math.exp %26 : vector<2x32xf32>
    %cst_10 = arith.constant 1.000000e+00 : f32
    %28 = vector.broadcast %cst_10 : f32 to vector<2x32xf32>
    %29 = arith.addf %28, %27 : vector<2x32xf32>
    %30 = arith.divf %28, %29 : vector<2x32xf32>
    %31 = arith.mulf %22, %8 : vector<2x32xf32>
    %32 = arith.mulf %16, %24 : vector<2x32xf32>
    %33 = arith.addf %31, %32 : vector<2x32xf32>
    %34 = math.tanh %33 : vector<2x32xf32>
    %35 = arith.mulf %30, %34 : vector<2x32xf32>
    %cst_11 = arith.constant dense<0.000000e+00> : vector<2x128xf32>
    %36 = tpu.matmul %35, %7, %cst_11 {dimension_numbers = #tpu.dot_dimension_numbers<[1], [0], [0], [1], [0, 0, 1, 1], [], []>} : vector<2x32xf32>, vector<32x128xf32>, vector<2x128xf32> -> vector<2x128xf32>
    %37 = vector.extract_strided_slice %6 {offsets = [0, 1, 0], sizes = [2, 1, 128], strides = [1, 1, 1]} : vector<2x8x128xf32> to vector<2x1x128xf32>
    %38 = vector.shape_cast %37 : vector<2x1x128xf32> to vector<2x128xf32>
    %39 = arith.addf %36, %38 : vector<2x128xf32>
    %40 = vector.extract_strided_slice %39 {offsets = [0, 0], sizes = [2, 32], strides = [1, 1]} : vector<2x128xf32> to vector<2x32xf32>
    %41 = arith.negf %40 : vector<2x32xf32>
    %42 = math.exp %41 : vector<2x32xf32>
    %cst_12 = arith.constant 1.000000e+00 : f32
    %43 = vector.broadcast %cst_12 : f32 to vector<2x32xf32>
    %44 = arith.addf %43, %42 : vector<2x32xf32>
    %45 = arith.divf %43, %44 : vector<2x32xf32>
    %46 = vector.extract_strided_slice %39 {offsets = [0, 32], sizes = [2, 32], strides = [1, 1]} : vector<2x128xf32> to vector<2x32xf32>
    %47 = arith.negf %46 : vector<2x32xf32>
    %48 = math.exp %47 : vector<2x32xf32>
    %cst_13 = arith.constant 1.000000e+00 : f32
    %49 = vector.broadcast %cst_13 : f32 to vector<2x32xf32>
    %50 = arith.addf %49, %48 : vector<2x32xf32>
    %51 = arith.divf %49, %50 : vector<2x32xf32>
    %52 = vector.extract_strided_slice %39 {offsets = [0, 64], sizes = [2, 32], strides = [1, 1]} : vector<2x128xf32> to vector<2x32xf32>
    %53 = math.tanh %52 : vector<2x32xf32>
    %54 = vector.extract_strided_slice %39 {offsets = [0, 96], sizes = [2, 32], strides = [1, 1]} : vector<2x128xf32> to vector<2x32xf32>
    %55 = arith.negf %54 : vector<2x32xf32>
    %56 = math.exp %55 : vector<2x32xf32>
    %cst_14 = arith.constant 1.000000e+00 : f32
    %57 = vector.broadcast %cst_14 : f32 to vector<2x32xf32>
    %58 = arith.addf %57, %56 : vector<2x32xf32>
    %59 = arith.divf %57, %58 : vector<2x32xf32>
    %60 = arith.mulf %51, %33 : vector<2x32xf32>
    %61 = arith.mulf %45, %53 : vector<2x32xf32>
    %62 = arith.addf %60, %61 : vector<2x32xf32>
    %63 = math.tanh %62 : vector<2x32xf32>
    %64 = arith.mulf %59, %63 : vector<2x32xf32>
    %cst_15 = arith.constant dense<0.000000e+00> : vector<2x128xf32>
    %65 = tpu.matmul %64, %7, %cst_15 {dimension_numbers = #tpu.dot_dimension_numbers<[1], [0], [0], [1], [0, 0, 1, 1], [], []>} : vector<2x32xf32>, vector<32x128xf32>, vector<2x128xf32> -> vector<2x128xf32>
    %66 = vector.extract_strided_slice %6 {offsets = [0, 2, 0], sizes = [2, 1, 128], strides = [1, 1, 1]} : vector<2x8x128xf32> to vector<2x1x128xf32>
    %67 = vector.shape_cast %66 : vector<2x1x128xf32> to vector<2x128xf32>
    %68 = arith.addf %65, %67 : vector<2x128xf32>
    %69 = vector.extract_strided_slice %68 {offsets = [0, 0], sizes = [2, 32], strides = [1, 1]} : vector<2x128xf32> to vector<2x32xf32>
    %70 = arith.negf %69 : vector<2x32xf32>
    %71 = math.exp %70 : vector<2x32xf32>
    %cst_16 = arith.constant 1.000000e+00 : f32
    %72 = vector.broadcast %cst_16 : f32 to vector<2x32xf32>
    %73 = arith.addf %72, %71 : vector<2x32xf32>
    %74 = arith.divf %72, %73 : vector<2x32xf32>
    %75 = vector.extract_strided_slice %68 {offsets = [0, 32], sizes = [2, 32], strides = [1, 1]} : vector<2x128xf32> to vector<2x32xf32>
    %76 = arith.negf %75 : vector<2x32xf32>
    %77 = math.exp %76 : vector<2x32xf32>
    %cst_17 = arith.constant 1.000000e+00 : f32
    %78 = vector.broadcast %cst_17 : f32 to vector<2x32xf32>
    %79 = arith.addf %78, %77 : vector<2x32xf32>
    %80 = arith.divf %78, %79 : vector<2x32xf32>
    %81 = vector.extract_strided_slice %68 {offsets = [0, 64], sizes = [2, 32], strides = [1, 1]} : vector<2x128xf32> to vector<2x32xf32>
    %82 = math.tanh %81 : vector<2x32xf32>
    %83 = vector.extract_strided_slice %68 {offsets = [0, 96], sizes = [2, 32], strides = [1, 1]} : vector<2x128xf32> to vector<2x32xf32>
    %84 = arith.negf %83 : vector<2x32xf32>
    %85 = math.exp %84 : vector<2x32xf32>
    %cst_18 = arith.constant 1.000000e+00 : f32
    %86 = vector.broadcast %cst_18 : f32 to vector<2x32xf32>
    %87 = arith.addf %86, %85 : vector<2x32xf32>
    %88 = arith.divf %86, %87 : vector<2x32xf32>
    %89 = arith.mulf %80, %62 : vector<2x32xf32>
    %90 = arith.mulf %74, %82 : vector<2x32xf32>
    %91 = arith.addf %89, %90 : vector<2x32xf32>
    %92 = math.tanh %91 : vector<2x32xf32>
    %93 = arith.mulf %88, %92 : vector<2x32xf32>
    %cst_19 = arith.constant dense<0.000000e+00> : vector<2x128xf32>
    %94 = tpu.matmul %93, %7, %cst_19 {dimension_numbers = #tpu.dot_dimension_numbers<[1], [0], [0], [1], [0, 0, 1, 1], [], []>} : vector<2x32xf32>, vector<32x128xf32>, vector<2x128xf32> -> vector<2x128xf32>
    %95 = vector.extract_strided_slice %6 {offsets = [0, 3, 0], sizes = [2, 1, 128], strides = [1, 1, 1]} : vector<2x8x128xf32> to vector<2x1x128xf32>
    %96 = vector.shape_cast %95 : vector<2x1x128xf32> to vector<2x128xf32>
    %97 = arith.addf %94, %96 : vector<2x128xf32>
    %98 = vector.extract_strided_slice %97 {offsets = [0, 0], sizes = [2, 32], strides = [1, 1]} : vector<2x128xf32> to vector<2x32xf32>
    %99 = arith.negf %98 : vector<2x32xf32>
    %100 = math.exp %99 : vector<2x32xf32>
    %cst_20 = arith.constant 1.000000e+00 : f32
    %101 = vector.broadcast %cst_20 : f32 to vector<2x32xf32>
    %102 = arith.addf %101, %100 : vector<2x32xf32>
    %103 = arith.divf %101, %102 : vector<2x32xf32>
    %104 = vector.extract_strided_slice %97 {offsets = [0, 32], sizes = [2, 32], strides = [1, 1]} : vector<2x128xf32> to vector<2x32xf32>
    %105 = arith.negf %104 : vector<2x32xf32>
    %106 = math.exp %105 : vector<2x32xf32>
    %cst_21 = arith.constant 1.000000e+00 : f32
    %107 = vector.broadcast %cst_21 : f32 to vector<2x32xf32>
    %108 = arith.addf %107, %106 : vector<2x32xf32>
    %109 = arith.divf %107, %108 : vector<2x32xf32>
    %110 = vector.extract_strided_slice %97 {offsets = [0, 64], sizes = [2, 32], strides = [1, 1]} : vector<2x128xf32> to vector<2x32xf32>
    %111 = math.tanh %110 : vector<2x32xf32>
    %112 = vector.extract_strided_slice %97 {offsets = [0, 96], sizes = [2, 32], strides = [1, 1]} : vector<2x128xf32> to vector<2x32xf32>
    %113 = arith.negf %112 : vector<2x32xf32>
    %114 = math.exp %113 : vector<2x32xf32>
    %cst_22 = arith.constant 1.000000e+00 : f32
    %115 = vector.broadcast %cst_22 : f32 to vector<2x32xf32>
    %116 = arith.addf %115, %114 : vector<2x32xf32>
    %117 = arith.divf %115, %116 : vector<2x32xf32>
    %118 = arith.mulf %109, %91 : vector<2x32xf32>
    %119 = arith.mulf %103, %111 : vector<2x32xf32>
    %120 = arith.addf %118, %119 : vector<2x32xf32>
    %121 = math.tanh %120 : vector<2x32xf32>
    %122 = arith.mulf %117, %121 : vector<2x32xf32>
    %cst_23 = arith.constant dense<0.000000e+00> : vector<2x128xf32>
    %123 = tpu.matmul %122, %7, %cst_23 {dimension_numbers = #tpu.dot_dimension_numbers<[1], [0], [0], [1], [0, 0, 1, 1], [], []>} : vector<2x32xf32>, vector<32x128xf32>, vector<2x128xf32> -> vector<2x128xf32>
    %124 = vector.extract_strided_slice %6 {offsets = [0, 4, 0], sizes = [2, 1, 128], strides = [1, 1, 1]} : vector<2x8x128xf32> to vector<2x1x128xf32>
    %125 = vector.shape_cast %124 : vector<2x1x128xf32> to vector<2x128xf32>
    %126 = arith.addf %123, %125 : vector<2x128xf32>
    %127 = vector.extract_strided_slice %126 {offsets = [0, 0], sizes = [2, 32], strides = [1, 1]} : vector<2x128xf32> to vector<2x32xf32>
    %128 = arith.negf %127 : vector<2x32xf32>
    %129 = math.exp %128 : vector<2x32xf32>
    %cst_24 = arith.constant 1.000000e+00 : f32
    %130 = vector.broadcast %cst_24 : f32 to vector<2x32xf32>
    %131 = arith.addf %130, %129 : vector<2x32xf32>
    %132 = arith.divf %130, %131 : vector<2x32xf32>
    %133 = vector.extract_strided_slice %126 {offsets = [0, 32], sizes = [2, 32], strides = [1, 1]} : vector<2x128xf32> to vector<2x32xf32>
    %134 = arith.negf %133 : vector<2x32xf32>
    %135 = math.exp %134 : vector<2x32xf32>
    %cst_25 = arith.constant 1.000000e+00 : f32
    %136 = vector.broadcast %cst_25 : f32 to vector<2x32xf32>
    %137 = arith.addf %136, %135 : vector<2x32xf32>
    %138 = arith.divf %136, %137 : vector<2x32xf32>
    %139 = vector.extract_strided_slice %126 {offsets = [0, 64], sizes = [2, 32], strides = [1, 1]} : vector<2x128xf32> to vector<2x32xf32>
    %140 = math.tanh %139 : vector<2x32xf32>
    %141 = vector.extract_strided_slice %126 {offsets = [0, 96], sizes = [2, 32], strides = [1, 1]} : vector<2x128xf32> to vector<2x32xf32>
    %142 = arith.negf %141 : vector<2x32xf32>
    %143 = math.exp %142 : vector<2x32xf32>
    %cst_26 = arith.constant 1.000000e+00 : f32
    %144 = vector.broadcast %cst_26 : f32 to vector<2x32xf32>
    %145 = arith.addf %144, %143 : vector<2x32xf32>
    %146 = arith.divf %144, %145 : vector<2x32xf32>
    %147 = arith.mulf %138, %120 : vector<2x32xf32>
    %148 = arith.mulf %132, %140 : vector<2x32xf32>
    %149 = arith.addf %147, %148 : vector<2x32xf32>
    %150 = math.tanh %149 : vector<2x32xf32>
    %151 = arith.mulf %146, %150 : vector<2x32xf32>
    %cst_27 = arith.constant dense<0.000000e+00> : vector<2x128xf32>
    %152 = tpu.matmul %151, %7, %cst_27 {dimension_numbers = #tpu.dot_dimension_numbers<[1], [0], [0], [1], [0, 0, 1, 1], [], []>} : vector<2x32xf32>, vector<32x128xf32>, vector<2x128xf32> -> vector<2x128xf32>
    %153 = vector.extract_strided_slice %6 {offsets = [0, 5, 0], sizes = [2, 1, 128], strides = [1, 1, 1]} : vector<2x8x128xf32> to vector<2x1x128xf32>
    %154 = vector.shape_cast %153 : vector<2x1x128xf32> to vector<2x128xf32>
    %155 = arith.addf %152, %154 : vector<2x128xf32>
    %156 = vector.extract_strided_slice %155 {offsets = [0, 0], sizes = [2, 32], strides = [1, 1]} : vector<2x128xf32> to vector<2x32xf32>
    %157 = arith.negf %156 : vector<2x32xf32>
    %158 = math.exp %157 : vector<2x32xf32>
    %cst_28 = arith.constant 1.000000e+00 : f32
    %159 = vector.broadcast %cst_28 : f32 to vector<2x32xf32>
    %160 = arith.addf %159, %158 : vector<2x32xf32>
    %161 = arith.divf %159, %160 : vector<2x32xf32>
    %162 = vector.extract_strided_slice %155 {offsets = [0, 32], sizes = [2, 32], strides = [1, 1]} : vector<2x128xf32> to vector<2x32xf32>
    %163 = arith.negf %162 : vector<2x32xf32>
    %164 = math.exp %163 : vector<2x32xf32>
    %cst_29 = arith.constant 1.000000e+00 : f32
    %165 = vector.broadcast %cst_29 : f32 to vector<2x32xf32>
    %166 = arith.addf %165, %164 : vector<2x32xf32>
    %167 = arith.divf %165, %166 : vector<2x32xf32>
    %168 = vector.extract_strided_slice %155 {offsets = [0, 64], sizes = [2, 32], strides = [1, 1]} : vector<2x128xf32> to vector<2x32xf32>
    %169 = math.tanh %168 : vector<2x32xf32>
    %170 = vector.extract_strided_slice %155 {offsets = [0, 96], sizes = [2, 32], strides = [1, 1]} : vector<2x128xf32> to vector<2x32xf32>
    %171 = arith.negf %170 : vector<2x32xf32>
    %172 = math.exp %171 : vector<2x32xf32>
    %cst_30 = arith.constant 1.000000e+00 : f32
    %173 = vector.broadcast %cst_30 : f32 to vector<2x32xf32>
    %174 = arith.addf %173, %172 : vector<2x32xf32>
    %175 = arith.divf %173, %174 : vector<2x32xf32>
    %176 = arith.mulf %167, %149 : vector<2x32xf32>
    %177 = arith.mulf %161, %169 : vector<2x32xf32>
    %178 = arith.addf %176, %177 : vector<2x32xf32>
    %179 = math.tanh %178 : vector<2x32xf32>
    %180 = arith.mulf %175, %179 : vector<2x32xf32>
    %cst_31 = arith.constant dense<0.000000e+00> : vector<2x128xf32>
    %181 = tpu.matmul %180, %7, %cst_31 {dimension_numbers = #tpu.dot_dimension_numbers<[1], [0], [0], [1], [0, 0, 1, 1], [], []>} : vector<2x32xf32>, vector<32x128xf32>, vector<2x128xf32> -> vector<2x128xf32>
    %182 = vector.extract_strided_slice %6 {offsets = [0, 6, 0], sizes = [2, 1, 128], strides = [1, 1, 1]} : vector<2x8x128xf32> to vector<2x1x128xf32>
    %183 = vector.shape_cast %182 : vector<2x1x128xf32> to vector<2x128xf32>
    %184 = arith.addf %181, %183 : vector<2x128xf32>
    %185 = vector.extract_strided_slice %184 {offsets = [0, 0], sizes = [2, 32], strides = [1, 1]} : vector<2x128xf32> to vector<2x32xf32>
    %186 = arith.negf %185 : vector<2x32xf32>
    %187 = math.exp %186 : vector<2x32xf32>
    %cst_32 = arith.constant 1.000000e+00 : f32
    %188 = vector.broadcast %cst_32 : f32 to vector<2x32xf32>
    %189 = arith.addf %188, %187 : vector<2x32xf32>
    %190 = arith.divf %188, %189 : vector<2x32xf32>
    %191 = vector.extract_strided_slice %184 {offsets = [0, 32], sizes = [2, 32], strides = [1, 1]} : vector<2x128xf32> to vector<2x32xf32>
    %192 = arith.negf %191 : vector<2x32xf32>
    %193 = math.exp %192 : vector<2x32xf32>
    %cst_33 = arith.constant 1.000000e+00 : f32
    %194 = vector.broadcast %cst_33 : f32 to vector<2x32xf32>
    %195 = arith.addf %194, %193 : vector<2x32xf32>
    %196 = arith.divf %194, %195 : vector<2x32xf32>
    %197 = vector.extract_strided_slice %184 {offsets = [0, 64], sizes = [2, 32], strides = [1, 1]} : vector<2x128xf32> to vector<2x32xf32>
    %198 = math.tanh %197 : vector<2x32xf32>
    %199 = vector.extract_strided_slice %184 {offsets = [0, 96], sizes = [2, 32], strides = [1, 1]} : vector<2x128xf32> to vector<2x32xf32>
    %200 = arith.negf %199 : vector<2x32xf32>
    %201 = math.exp %200 : vector<2x32xf32>
    %cst_34 = arith.constant 1.000000e+00 : f32
    %202 = vector.broadcast %cst_34 : f32 to vector<2x32xf32>
    %203 = arith.addf %202, %201 : vector<2x32xf32>
    %204 = arith.divf %202, %203 : vector<2x32xf32>
    %205 = arith.mulf %196, %178 : vector<2x32xf32>
    %206 = arith.mulf %190, %198 : vector<2x32xf32>
    %207 = arith.addf %205, %206 : vector<2x32xf32>
    %208 = math.tanh %207 : vector<2x32xf32>
    %209 = arith.mulf %204, %208 : vector<2x32xf32>
    %cst_35 = arith.constant dense<0.000000e+00> : vector<2x128xf32>
    %210 = tpu.matmul %209, %7, %cst_35 {dimension_numbers = #tpu.dot_dimension_numbers<[1], [0], [0], [1], [0, 0, 1, 1], [], []>} : vector<2x32xf32>, vector<32x128xf32>, vector<2x128xf32> -> vector<2x128xf32>
    %211 = vector.extract_strided_slice %6 {offsets = [0, 7, 0], sizes = [2, 1, 128], strides = [1, 1, 1]} : vector<2x8x128xf32> to vector<2x1x128xf32>
    %212 = vector.shape_cast %211 : vector<2x1x128xf32> to vector<2x128xf32>
    %213 = arith.addf %210, %212 : vector<2x128xf32>
    %214 = vector.extract_strided_slice %213 {offsets = [0, 0], sizes = [2, 32], strides = [1, 1]} : vector<2x128xf32> to vector<2x32xf32>
    %215 = arith.negf %214 : vector<2x32xf32>
    %216 = math.exp %215 : vector<2x32xf32>
    %cst_36 = arith.constant 1.000000e+00 : f32
    %217 = vector.broadcast %cst_36 : f32 to vector<2x32xf32>
    %218 = arith.addf %217, %216 : vector<2x32xf32>
    %219 = arith.divf %217, %218 : vector<2x32xf32>
    %220 = vector.extract_strided_slice %213 {offsets = [0, 32], sizes = [2, 32], strides = [1, 1]} : vector<2x128xf32> to vector<2x32xf32>
    %221 = arith.negf %220 : vector<2x32xf32>
    %222 = math.exp %221 : vector<2x32xf32>
    %cst_37 = arith.constant 1.000000e+00 : f32
    %223 = vector.broadcast %cst_37 : f32 to vector<2x32xf32>
    %224 = arith.addf %223, %222 : vector<2x32xf32>
    %225 = arith.divf %223, %224 : vector<2x32xf32>
    %226 = vector.extract_strided_slice %213 {offsets = [0, 64], sizes = [2, 32], strides = [1, 1]} : vector<2x128xf32> to vector<2x32xf32>
    %227 = math.tanh %226 : vector<2x32xf32>
    %228 = vector.extract_strided_slice %213 {offsets = [0, 96], sizes = [2, 32], strides = [1, 1]} : vector<2x128xf32> to vector<2x32xf32>
    %229 = arith.negf %228 : vector<2x32xf32>
    %230 = math.exp %229 : vector<2x32xf32>
    %cst_38 = arith.constant 1.000000e+00 : f32
    %231 = vector.broadcast %cst_38 : f32 to vector<2x32xf32>
    %232 = arith.addf %231, %230 : vector<2x32xf32>
    %233 = arith.divf %231, %232 : vector<2x32xf32>
    %234 = arith.mulf %225, %207 : vector<2x32xf32>
    %235 = arith.mulf %219, %227 : vector<2x32xf32>
    %236 = arith.addf %234, %235 : vector<2x32xf32>
    %237 = math.tanh %236 : vector<2x32xf32>
    %238 = arith.mulf %233, %237 : vector<2x32xf32>
    %c0_39 = arith.constant 0 : index
    %c0_40 = arith.constant 0 : index
    %239 = vector.load %arg4[%c0_39, %c0_40] : memref<32x8xf32, #tpu.memory_space<vmem>>, vector<32x8xf32>
    %cst_41 = arith.constant dense<0.000000e+00> : vector<2x8xf32>
    %240 = tpu.matmul %238, %239, %cst_41 {dimension_numbers = #tpu.dot_dimension_numbers<[1], [0], [0], [1], [0, 0, 1, 1], [], []>} : vector<2x32xf32>, vector<32x8xf32>, vector<2x8xf32> -> vector<2x8xf32>
    %c0_42 = arith.constant 0 : index
    %c0_43 = arith.constant 0 : index
    %241 = vector.load %arg5[%c0_42, %c0_43] : memref<1x8xf32, #tpu.memory_space<vmem>>, vector<1x8xf32>
    %242 = vector.broadcast %241 : vector<1x8xf32> to vector<2x8xf32>
    %243 = arith.addf %240, %242 : vector<2x8xf32>
    %cst_44 = arith.constant dense<0xFF800000> : vector<2xf32>
    %244 = vector.multi_reduction <maximumf>, %243, %cst_44 [1] : vector<2x8xf32> to vector<2xf32>
    %245 = vector.shape_cast %244 : vector<2xf32> to vector<2x1xf32>
    %246 = vector.broadcast %245 : vector<2x1xf32> to vector<2x8xf32>
    %247 = arith.subf %243, %246 : vector<2x8xf32>
    %248 = math.exp %247 : vector<2x8xf32>
    %cst_45 = arith.constant dense<0.000000e+00> : vector<2xf32>
    %249 = vector.multi_reduction <add>, %248, %cst_45 [1] : vector<2x8xf32> to vector<2xf32>
    %250 = vector.shape_cast %249 : vector<2xf32> to vector<2x1xf32>
    %251 = vector.broadcast %250 : vector<2x1xf32> to vector<2x8xf32>
    %252 = arith.divf %248, %251 : vector<2x8xf32>
    %c0_46 = arith.constant 0 : index
    %c0_47 = arith.constant 0 : index
    %253 = vector.load %arg6[%c0_46, %c0_47] : memref<2x8xf32, #tpu.memory_space<vmem>>, vector<2x8xf32>
    tpu.vector_store %arg6[%c0_46, %c0_47], %252 {strides = array<i32>} : memref<2x8xf32, #tpu.memory_space<vmem>>, vector<2x8xf32>,
    return
  }
}

</mosaic_0001>

<llo_original>
// kernel: tpu_custom_call.1
$region0: #{tpu_custom_call.1}
  #allocation0 [shape = 'u32[]', space=smem, size = 0x4, offset = 0x4, fixed_abs, tag = 'smem constant byte address 0x4 - core index']
  #allocation1 [shape = 'u32[72,128]{1,0:T(1,128)}', space=vmem, size = 0x9000, scoped, tag = 'internal scratch']
  %s0 = inlined_call_operand.hbm [shape: f32[16,16], index: 0, kind: input, shape index: {}]
  %s1 = inlined_call_operand.hbm [shape: f32[16,128], index: 1, kind: input, shape index: {}]
  %s2 = inlined_call_operand.vmem [shape: f32[32,128], index: 2, kind: input, shape index: {}]
  %s3 = inlined_call_operand.vmem [shape: f32[1,128], index: 3, kind: input, shape index: {}]
  %s4 = inlined_call_operand.vmem [shape: f32[32,8], index: 4, kind: input, shape index: {}]
  %s5 = inlined_call_operand.vmem [shape: f32[1,8], index: 5, kind: input, shape index: {}]
  %s6 = inlined_call_operand.hbm [shape: f32[2,8], index: 6, kind: output, shape index: {}]
  %s7 = sld [smem:[#allocation0]]
  $region42: #{tpu_custom_call.1} parent=0
    _
  %s9 = ssub.s32 1, %s7
  %s10 = scalar_select 0, %s9, %s7
  $region1: #{tpu_custom_call.1} parent=0
    #allocation2 [shape = 'u8[8192]{0}', space=vmem, size = 0x2000, scoped, tag = 'input window, operand 0, single buffered']
    #allocation3 [shape = 's32[1]{0}', space=sflag, size = 0x4, scoped, tag = 'scoped memory for tpu_custom_call.1']
    #allocation4 [shape = 's32[1]{0}', space=sflag, size = 0x4, scoped, tag = 'scoped memory for tpu_custom_call.1']
    #allocation5 [shape = 'u8[8192]{0}', space=vmem, size = 0x2000, scoped, tag = 'input window, operand 1, single buffered']
    #allocation6 [shape = 's32[1]{0}', space=sflag, size = 0x4, scoped, tag = 'scoped memory for tpu_custom_call.1']
    #allocation7 [shape = 'u8[1024]{0}', space=vmem, size = 0x400, scoped, tag = 'output window, operand 0, single buffered']
    %11 = vsyncpa [#allocation3], 0
    %12 = vsyncpa [#allocation6], 0
    %13 = vsyncpa [#allocation4], 0
    // Predicated region
    $region2: #{tpu_custom_call.1} parent=1 // pred_check
      _
    $region3: #{tpu_custom_call.1} parent=1 // pred_check_branch
      %15 = sbr.rel (0) target = $region5
    $region4: #{tpu_custom_call.1} parent=1 // pred_region
      %17 = vsyncadd [#allocation3], 0
      %s18 = sshll.u32 %s0, 4
      %s19 = int_to_ptr.hbm [resolvable:$true] %s18
      %s20 = sshll.u32 [#allocation2], 4
      %s21 = int_to_ptr.vmem [resolvable:$true] %s20
      %26 = dma.hbm_to_vmem [thread:$0]  %s19, 256, %s21, [#allocation3], 128, 128, 8
    $region5: #{tpu_custom_call.1} parent=1 // pred_fallthru
      _
    // Predicated region
    $region6: #{tpu_custom_call.1} parent=1 // pred_check
      _
    $region7: #{tpu_custom_call.1} parent=1 // pred_check_branch
      %28 = sbr.rel (0) target = $region9
    $region8: #{tpu_custom_call.1} parent=1 // pred_region
      %30 = vsyncadd [#allocation6], 0
      %s31 = sshll.u32 %s1, 4
      %s32 = int_to_ptr.hbm [resolvable:$true] %s31
      %s33 = sshll.u32 [#allocation5], 4
      %s34 = int_to_ptr.vmem [resolvable:$true] %s33
      %39 = dma.hbm_to_vmem [thread:$0]  %s32, 256, %s34, [#allocation6], 128, 128, 8
    $region9: #{tpu_custom_call.1} parent=1 // pred_fallthru
      _
    // Predicated region
    $region10: #{tpu_custom_call.1} parent=1 // pred_check
      _
    $region11: #{tpu_custom_call.1} parent=1 // pred_check_branch
      %41 = sbr.rel (0) target = $region13
    $region12: #{tpu_custom_call.1} parent=1 // pred_region
      _
    $region13: #{tpu_custom_call.1} parent=1 // pred_fallthru
      _
    // Predicated region
    $region14: #{tpu_custom_call.1} parent=1 // pred_check
      _
    $region15: #{tpu_custom_call.1} parent=1 // pred_check_branch
      %43 = sbr.rel (0) target = $region17
    $region16: #{tpu_custom_call.1} parent=1 // pred_region
      _
    $region17: #{tpu_custom_call.1} parent=1 // pred_fallthru
      _
    // Predicated region
    $region18: #{tpu_custom_call.1} parent=1 // pred_check
      _
    $region19: #{tpu_custom_call.1} parent=1 // pred_check_branch
      %45 = sbr.rel (0) target = $region21
    $region20: #{tpu_custom_call.1} parent=1 // pred_region
      _
    $region21: #{tpu_custom_call.1} parent=1 // pred_fallthru
      _
    // Predicated region
    $region22: #{tpu_custom_call.1} parent=1 // pred_check
      _
    $region23: #{tpu_custom_call.1} parent=1 // pred_check_branch
      %47 = sbr.rel (0) target = $region25
    $region24: #{tpu_custom_call.1} parent=1 // pred_region
      _
    $region25: #{tpu_custom_call.1} parent=1 // pred_fallthru
      _
    // Predicated region
    $region26: #{tpu_custom_call.1} parent=1 // pred_check
      _
    $region27: #{tpu_custom_call.1} parent=1 // pred_check_branch
      %49 = sbr.rel (0) target = $region29
    $region28: #{tpu_custom_call.1} parent=1 // pred_region
      %51 = dma.done [#allocation3], 256
    $region29: #{tpu_custom_call.1} parent=1 // pred_fallthru
      _
    // Predicated region
    $region30: #{tpu_custom_call.1} parent=1 // pred_check
      _
    $region31: #{tpu_custom_call.1} parent=1 // pred_check_branch
      %53 = sbr.rel (0) target = $region33
    $region32: #{tpu_custom_call.1} parent=1 // pred_region
      %55 = dma.done [#allocation6], 256
    $region33: #{tpu_custom_call.1} parent=1 // pred_fallthru
      _
    %v56 = vld [vmem:[#allocation2] sm:$0xff]
    %v57 = vld [vmem:[#allocation2 + $0x8] sm:$0xff]
    %v58 = vld [vmem:[#allocation5] sm:$0xff]
    %v59 = vld [vmem:[#allocation5 + $0x8] sm:$0xff]
    %v60 = vld [vmem:[%s3] sm:$0x1]
    %v62 = vperm.slane %v60, 0
    %vm64 = vcmask 130048
    %v66 = vsel %vm64, %v56, 0
    %v69 = vsel %vm64, %v57, 0
    %71 = vmatpush.msra.mxu0 0.0
    %72 = vmatpush.msra.mxu0 0.0
    %73 = vmatpush.msra.mxu0 0.0
    %74 = vmatpush.msra.mxu0 0.0
    %75 = vmatpush.msra.mxu0 0.0
    %76 = vmatpush.msra.mxu0 0.0
    %77 = vmatpush.msra.mxu0 0.0
    %78 = vmatpush.msra.mxu0 0.0
    %79 = vmatpush.msra.mxu0 0.0
    %80 = vmatpush.msra.mxu0 0.0
    %81 = vmatpush.msra.mxu0 0.0
    %82 = vmatpush.msra.mxu0 0.0
    %83 = vmatpush.msra.mxu0 0.0
    %84 = vmatpush.msra.mxu0 0.0
    %85 = vmatpush.msra.mxu0 %v59
    %86 = vmatpush.msra.mxu0 %v58
    %87 = vmatmul.f32.gmra.mxu0 %v66
    %v88 = vpop.f32.mrf.mxu0
    %v89 = vadd.f32 %v62, %v88
    %90 = vmatmul.f32.gmra.mxu0 %v69
    %v91 = vpop.f32.mrf.mxu0
    %v92 = vadd.f32 %v62, %v91
    %93 = vdwg.mxu0
    %v94 = vld [vmem:[%s2] sm:$0xff]
    %v95 = vld [vmem:[%s2 + $0x8] sm:$0xff]
    %v96 = vld [vmem:[%s2 + $0x10] sm:$0xff]
    %v97 = vld [vmem:[%s2 + $0x18] sm:$0xff]
    %v98 = vxor.u32 %v89, 2147483648
    %v99 = vxor.u32 %v92, 2147483648
    %v100 = vmul.f32 %v98, 1.442695
    %v101 = vpow.pop %v100
    %v102 = vmul.f32 %v99, 1.442695
    %v103 = vpow.pop %v102
    %v104 = vadd.f32 %v101, 1.0
    %v105 = vadd.f32 %v103, 1.0
    %v106 = vrcp.pop %v104
    %v107 = vmul.f32 %v104, %v106
    %v108 = vsub.f32 1.0, %v107
    %v109 = vmul.f32 %v106, %v108
    %v110 = vadd.f32 %v106, %v109
    %vm111 = vweird.f32 %v104
    %vm112 = vweird.f32 %v106
    %vm113 = vmor %vm111, %vm112
    %v114 = vsel %vm113, %v106, %v110
    %v115 = vand.u32 2147483647, %v104
    %vm116 = vcmp.eq.f32.partialorder %v115, 8.507059e+37
    %v117 = vand.u32 %v104, 2147483648
    %v118 = vor.u32 1.1754944e-38, %v117
    %v119 = vsel %vm116, %v118, %v114
    %v120 = vmul.f32 1.0, %v119
    %v121 = vrcp.pop %v105
    %v122 = vmul.f32 %v105, %v121
    %v123 = vsub.f32 1.0, %v122
    %v124 = vmul.f32 %v121, %v123
    %v125 = vadd.f32 %v121, %v124
    %vm126 = vweird.f32 %v105
    %vm127 = vweird.f32 %v121
    %vm128 = vmor %vm126, %vm127
    %v129 = vsel %vm128, %v121, %v125
    %v130 = vand.u32 2147483647, %v105
    %vm131 = vcmp.eq.f32.partialorder %v130, 8.507059e+37
    %v132 = vand.u32 %v105, 2147483648
    %v133 = vor.u32 1.1754944e-38, %v132
    %v134 = vsel %vm131, %v133, %v129
    %v135 = vmul.f32 1.0, %v134
    %v136 = vtanh.pop %v89
    %v137 = vtanh.pop %v92
    %v138 = vmul.f32 %v120, 0.0
    %v139 = vmul.f32 %v135, 0.0
    %142 = vrot.lane.b32.xlu0 %v136, 64
    %v143 = vpop.permute.xlu0 %142
    %144 = vrot.lane.b32.xlu0 %v137, 64
    %v145 = vpop.permute.xlu0 %144
    %v148 = vmul.f32 %v120, %v143
    %v149 = vmul.f32 %v135, %v145
    %152 = vrot.lane.b32.xlu0 %v148, 32
    %v153 = vpop.permute.xlu0 %152
    %154 = vrot.lane.b32.xlu0 %v149, 32
    %v155 = vpop.permute.xlu0 %154
    %v158 = vadd.f32 %v138, %v153
    %v159 = vadd.f32 %v139, %v155
    %v160 = vtanh.pop %v158
    %v161 = vtanh.pop %v159
    %164 = vrot.lane.b32.xlu0 %v160, 64
    %v165 = vpop.permute.xlu0 %164
    %166 = vrot.lane.b32.xlu0 %v161, 64
    %v167 = vpop.permute.xlu0 %166
    %v170 = vmul.f32 %v120, %v165
    %v171 = vmul.f32 %v135, %v167
    %v174 = vrot.slane %v171, 7
    %vm175 = vcmask 1041409
    %v176 = vsel %vm175, %v174, %v170
    %177 = vrot.lane.b32.xlu0 %v176, 32
    %v178 = vpop.permute.xlu0 %177
    %v181 = vrot.slane %v89, 1
    %v182 = vsel %vm175, %v92, %v181
    %vm184 = vcmask 261120
    %v185 = vsel %vm184, %v178, 0
    %187 = vmatpush.msra.mxu0 0.0
    %188 = vmatpush.msra.mxu0 0.0
    %189 = vmatpush.msra.mxu0 0.0
    %190 = vmatpush.msra.mxu0 0.0
    %191 = vmatpush.msra.mxu0 0.0
    %192 = vmatpush.msra.mxu0 0.0
    %193 = vmatpush.msra.mxu0 0.0
    %194 = vmatpush.msra.mxu0 0.0
    %195 = vmatpush.msra.mxu0 0.0
    %196 = vmatpush.msra.mxu0 0.0
    %197 = vmatpush.msra.mxu0 0.0
    %198 = vmatpush.msra.mxu0 0.0
    %199 = vmatpush.msra.mxu0 %v97
    %200 = vmatpush.msra.mxu0 %v96
    %201 = vmatpush.msra.mxu0 %v95
    %202 = vmatpush.msra.mxu0 %v94
    %203 = vmatmul.f32.gmra.mxu0 %v185
    %v204 = vpop.f32.mrf.mxu0
    %v205 = vadd.f32 %v182, %v204
    %206 = vdwg.mxu0
    %v207 = vxor.u32 %v205, 2147483648
    %v208 = vmul.f32 %v207, 1.442695
    %v209 = vpow.pop %v208
    %v210 = vadd.f32 %v209, 1.0
    %v211 = vrcp.pop %v210
    %v212 = vmul.f32 %v210, %v211
    %v213 = vsub.f32 1.0, %v212
    %v214 = vmul.f32 %v211, %v213
    %v215 = vadd.f32 %v211, %v214
    %vm216 = vweird.f32 %v210
    %vm217 = vweird.f32 %v211
    %vm218 = vmor %vm216, %vm217
    %v219 = vsel %vm218, %v211, %v215
    %v220 = vand.u32 2147483647, %v210
    %vm221 = vcmp.eq.f32.partialorder %v220, 8.507059e+37
    %v222 = vand.u32 %v210, 2147483648
    %v223 = vor.u32 1.1754944e-38, %v222
    %v224 = vsel %vm221, %v223, %v219
    %v225 = vmul.f32 1.0, %v224
    %v226 = vtanh.pop %v205
    %v229 = vrot.slane %v159, 7
    %v230 = vsel %vm175, %v229, %v158
    %v232 = vmul.f32 %v225, %v230
    %234 = vrot.lane.b32.xlu0 %v226, 64
    %v235 = vpop.permute.xlu0 %234
    %v237 = vmul.f32 %v225, %v235
    %239 = vrot.lane.b32.xlu0 %v237, 32
    %v240 = vpop.permute.xlu0 %239
    %v242 = vadd.f32 %v232, %v240
    %v243 = vtanh.pop %v242
    %245 = vrot.lane.b32.xlu0 %v243, 64
    %v246 = vpop.permute.xlu0 %245
    %v248 = vmul.f32 %v225, %v246
    %250 = vrot.lane.b32.xlu0 %v248, 32
    %v251 = vpop.permute.xlu0 %250
    %v252 = vrot.slane %v89, 2
    %v253 = vrot.slane %v92, 1
    %v254 = vsel %vm175, %v253, %v252
    %v256 = vsel %vm184, %v251, 0
    %258 = vmatpush.msra.mxu0 0.0
    %259 = vmatpush.msra.mxu0 0.0
    %260 = vmatpush.msra.mxu0 0.0
    %261 = vmatpush.msra.mxu0 0.0
    %262 = vmatpush.msra.mxu0 0.0
    %263 = vmatpush.msra.mxu0 0.0
    %264 = vmatpush.msra.mxu0 0.0
    %265 = vmatpush.msra.mxu0 0.0
    %266 = vmatpush.msra.mxu0 0.0
    %267 = vmatpush.msra.mxu0 0.0
    %268 = vmatpush.msra.mxu0 0.0
    %269 = vmatpush.msra.mxu0 0.0
    %270 = vmatpush.msra.mxu0 %v97
    %271 = vmatpush.msra.mxu0 %v96
    %272 = vmatpush.msra.mxu0 %v95
    %273 = vmatpush.msra.mxu0 %v94
    %274 = vmatmul.f32.gmra.mxu0 %v256
    %v275 = vpop.f32.mrf.mxu0
    %v276 = vadd.f32 %v254, %v275
    %277 = vdwg.mxu0
    %v278 = vxor.u32 %v276, 2147483648
    %v279 = vmul.f32 %v278, 1.442695
    %v280 = vpow.pop %v279
    %v281 = vadd.f32 %v280, 1.0
    %v282 = vrcp.pop %v281
    %v283 = vmul.f32 %v281, %v282
    %v284 = vsub.f32 1.0, %v283
    %v285 = vmul.f32 %v282, %v284
    %v286 = vadd.f32 %v282, %v285
    %vm287 = vweird.f32 %v281
    %vm288 = vweird.f32 %v282
    %vm289 = vmor %vm287, %vm288
    %v290 = vsel %vm289, %v282, %v286
    %v291 = vand.u32 2147483647, %v281
    %vm292 = vcmp.eq.f32.partialorder %v291, 8.507059e+37
    %v293 = vand.u32 %v281, 2147483648
    %v294 = vor.u32 1.1754944e-38, %v293
    %v295 = vsel %vm292, %v294, %v290
    %v296 = vmul.f32 1.0, %v295
    %v297 = vtanh.pop %v276
    %v298 = vmul.f32 %v296, %v242
    %300 = vrot.lane.b32.xlu0 %v297, 64
    %v301 = vpop.permute.xlu0 %300
    %v303 = vmul.f32 %v296, %v301
    %305 = vrot.lane.b32.xlu0 %v303, 32
    %v306 = vpop.permute.xlu0 %305
    %v308 = vadd.f32 %v298, %v306
    %v309 = vtanh.pop %v308
    %311 = vrot.lane.b32.xlu0 %v309, 64
    %v312 = vpop.permute.xlu0 %311
    %v314 = vmul.f32 %v296, %v312
    %316 = vrot.lane.b32.xlu0 %v314, 32
    %v317 = vpop.permute.xlu0 %316
    %v318 = vrot.slane %v89, 3
    %v319 = vrot.slane %v92, 2
    %v320 = vsel %vm175, %v319, %v318
    %v322 = vsel %vm184, %v317, 0
    %324 = vmatpush.msra.mxu0 0.0
    %325 = vmatpush.msra.mxu0 0.0
    %326 = vmatpush.msra.mxu0 0.0
    %327 = vmatpush.msra.mxu0 0.0
    %328 = vmatpush.msra.mxu0 0.0
    %329 = vmatpush.msra.mxu0 0.0
    %330 = vmatpush.msra.mxu0 0.0
    %331 = vmatpush.msra.mxu0 0.0
    %332 = vmatpush.msra.mxu0 0.0
    %333 = vmatpush.msra.mxu0 0.0
    %334 = vmatpush.msra.mxu0 0.0
    %335 = vmatpush.msra.mxu0 0.0
    %336 = vmatpush.msra.mxu0 %v97
    %337 = vmatpush.msra.mxu0 %v96
    %338 = vmatpush.msra.mxu0 %v95
    %339 = vmatpush.msra.mxu0 %v94
    %340 = vmatmul.f32.gmra.mxu0 %v322
    %v341 = vpop.f32.mrf.mxu0
    %v342 = vadd.f32 %v320, %v341
    %343 = vdwg.mxu0
    %v344 = vxor.u32 %v342, 2147483648
    %v345 = vmul.f32 %v344, 1.442695
    %v346 = vpow.pop %v345
    %v347 = vadd.f32 %v346, 1.0
    %v348 = vrcp.pop %v347
    %v349 = vmul.f32 %v347, %v348
    %v350 = vsub.f32 1.0, %v349
    %v351 = vmul.f32 %v348, %v350
    %v352 = vadd.f32 %v348, %v351
    %vm353 = vweird.f32 %v347
    %vm354 = vweird.f32 %v348
    %vm355 = vmor %vm353, %vm354
    %v356 = vsel %vm355, %v348, %v352
    %v357 = vand.u32 2147483647, %v347
    %vm358 = vcmp.eq.f32.partialorder %v357, 8.507059e+37
    %v359 = vand.u32 %v347, 2147483648
    %v360 = vor.u32 1.1754944e-38, %v359
    %v361 = vsel %vm358, %v360, %v356
    %v362 = vmul.f32 1.0, %v361
    %v363 = vtanh.pop %v342
    %v364 = vmul.f32 %v362, %v308
    %366 = vrot.lane.b32.xlu0 %v363, 64
    %v367 = vpop.permute.xlu0 %366
    %v369 = vmul.f32 %v362, %v367
    %371 = vrot.lane.b32.xlu0 %v369, 32
    %v372 = vpop.permute.xlu0 %371
    %v374 = vadd.f32 %v364, %v372
    %v375 = vtanh.pop %v374
    %377 = vrot.lane.b32.xlu0 %v375, 64
    %v378 = vpop.permute.xlu0 %377
    %v380 = vmul.f32 %v362, %v378
    %382 = vrot.lane.b32.xlu0 %v380, 32
    %v383 = vpop.permute.xlu0 %382
    %v384 = vrot.slane %v89, 4
    %v385 = vrot.slane %v92, 3
    %v386 = vsel %vm175, %v385, %v384
    %v388 = vsel %vm184, %v383, 0
    %390 = vmatpush.msra.mxu0 0.0
    %391 = vmatpush.msra.mxu0 0.0
    %392 = vmatpush.msra.mxu0 0.0
    %393 = vmatpush.msra.mxu0 0.0
    %394 = vmatpush.msra.mxu0 0.0
    %395 = vmatpush.msra.mxu0 0.0
    %396 = vmatpush.msra.mxu0 0.0
    %397 = vmatpush.msra.mxu0 0.0
    %398 = vmatpush.msra.mxu0 0.0
    %399 = vmatpush.msra.mxu0 0.0
    %400 = vmatpush.msra.mxu0 0.0
    %401 = vmatpush.msra.mxu0 0.0
    %402 = vmatpush.msra.mxu0 %v97
    %403 = vmatpush.msra.mxu0 %v96
    %404 = vmatpush.msra.mxu0 %v95
    %405 = vmatpush.msra.mxu0 %v94
    %406 = vmatmul.f32.gmra.mxu0 %v388
    %v407 = vpop.f32.mrf.mxu0
    %v408 = vadd.f32 %v386, %v407
    %409 = vdwg.mxu0
    %v410 = vxor.u32 %v408, 2147483648
    %v411 = vmul.f32 %v410, 1.442695
    %v412 = vpow.pop %v411
    %v413 = vadd.f32 %v412, 1.0
    %v414 = vrcp.pop %v413
    %v415 = vmul.f32 %v413, %v414
    %v416 = vsub.f32 1.0, %v415
    %v417 = vmul.f32 %v414, %v416
    %v418 = vadd.f32 %v414, %v417
    %vm419 = vweird.f32 %v413
    %vm420 = vweird.f32 %v414
    %vm421 = vmor %vm419, %vm420
    %v422 = vsel %vm421, %v414, %v418
    %v423 = vand.u32 2147483647, %v413
    %vm424 = vcmp.eq.f32.partialorder %v423, 8.507059e+37
    %v425 = vand.u32 %v413, 2147483648
    %v426 = vor.u32 1.1754944e-38, %v425
    %v427 = vsel %vm424, %v426, %v422
    %v428 = vmul.f32 1.0, %v427
    %v429 = vtanh.pop %v408
    %v430 = vmul.f32 %v428, %v374
    %432 = vrot.lane.b32.xlu0 %v429, 64
    %v433 = vpop.permute.xlu0 %432
    %v435 = vmul.f32 %v428, %v433
    %437 = vrot.lane.b32.xlu0 %v435, 32
    %v438 = vpop.permute.xlu0 %437
    %v440 = vadd.f32 %v430, %v438
    %v441 = vtanh.pop %v440
    %443 = vrot.lane.b32.xlu0 %v441, 64
    %v444 = vpop.permute.xlu0 %443
    %v446 = vmul.f32 %v428, %v444
    %448 = vrot.lane.b32.xlu0 %v446, 32
    %v449 = vpop.permute.xlu0 %448
    %v450 = vrot.slane %v89, 5
    %v451 = vrot.slane %v92, 4
    %v452 = vsel %vm175, %v451, %v450
    %v454 = vsel %vm184, %v449, 0
    %456 = vmatpush.msra.mxu0 0.0
    %457 = vmatpush.msra.mxu0 0.0
    %458 = vmatpush.msra.mxu0 0.0
    %459 = vmatpush.msra.mxu0 0.0
    %460 = vmatpush.msra.mxu0 0.0
    %461 = vmatpush.msra.mxu0 0.0
    %462 = vmatpush.msra.mxu0 0.0
    %463 = vmatpush.msra.mxu0 0.0
    %464 = vmatpush.msra.mxu0 0.0
    %465 = vmatpush.msra.mxu0 0.0
    %466 = vmatpush.msra.mxu0 0.0
    %467 = vmatpush.msra.mxu0 0.0
    %468 = vmatpush.msra.mxu0 %v97
    %469 = vmatpush.msra.mxu0 %v96
    %470 = vmatpush.msra.mxu0 %v95
    %471 = vmatpush.msra.mxu0 %v94
    %472 = vmatmul.f32.gmra.mxu0 %v454
    %v473 = vpop.f32.mrf.mxu0
    %v474 = vadd.f32 %v452, %v473
    %475 = vdwg.mxu0
    %v476 = vxor.u32 %v474, 2147483648
    %v477 = vmul.f32 %v476, 1.442695
    %v478 = vpow.pop %v477
    %v479 = vadd.f32 %v478, 1.0
    %v480 = vrcp.pop %v479
    %v481 = vmul.f32 %v479, %v480
    %v482 = vsub.f32 1.0, %v481
    %v483 = vmul.f32 %v480, %v482
    %v484 = vadd.f32 %v480, %v483
    %vm485 = vweird.f32 %v479
    %vm486 = vweird.f32 %v480
    %vm487 = vmor %vm485, %vm486
    %v488 = vsel %vm487, %v480, %v484
    %v489 = vand.u32 2147483647, %v479
    %vm490 = vcmp.eq.f32.partialorder %v489, 8.507059e+37
    %v491 = vand.u32 %v479, 2147483648
    %v492 = vor.u32 1.1754944e-38, %v491
    %v493 = vsel %vm490, %v492, %v488
    %v494 = vmul.f32 1.0, %v493
    %v495 = vtanh.pop %v474
    %v496 = vmul.f32 %v494, %v440
    %498 = vrot.lane.b32.xlu0 %v495, 64
    %v499 = vpop.permute.xlu0 %498
    %v501 = vmul.f32 %v494, %v499
    %503 = vrot.lane.b32.xlu0 %v501, 32
    %v504 = vpop.permute.xlu0 %503
    %v506 = vadd.f32 %v496, %v504
    %v507 = vtanh.pop %v506
    %509 = vrot.lane.b32.xlu0 %v507, 64
    %v510 = vpop.permute.xlu0 %509
    %v512 = vmul.f32 %v494, %v510
    %514 = vrot.lane.b32.xlu0 %v512, 32
    %v515 = vpop.permute.xlu0 %514
    %v516 = vrot.slane %v89, 6
    %v517 = vrot.slane %v92, 5
    %v518 = vsel %vm175, %v517, %v516
    %v520 = vsel %vm184, %v515, 0
    %522 = vmatpush.msra.mxu0 0.0
    %523 = vmatpush.msra.mxu0 0.0
    %524 = vmatpush.msra.mxu0 0.0
    %525 = vmatpush.msra.mxu0 0.0
    %526 = vmatpush.msra.mxu0 0.0
    %527 = vmatpush.msra.mxu0 0.0
    %528 = vmatpush.msra.mxu0 0.0
    %529 = vmatpush.msra.mxu0 0.0
    %530 = vmatpush.msra.mxu0 0.0
    %531 = vmatpush.msra.mxu0 0.0
    %532 = vmatpush.msra.mxu0 0.0
    %533 = vmatpush.msra.mxu0 0.0
    %534 = vmatpush.msra.mxu0 %v97
    %535 = vmatpush.msra.mxu0 %v96
    %536 = vmatpush.msra.mxu0 %v95
    %537 = vmatpush.msra.mxu0 %v94
    %538 = vmatmul.f32.gmra.mxu0 %v520
    %v539 = vpop.f32.mrf.mxu0
    %v540 = vadd.f32 %v518, %v539
    %541 = vdwg.mxu0
    %v542 = vxor.u32 %v540, 2147483648
    %v543 = vmul.f32 %v542, 1.442695
    %v544 = vpow.pop %v543
    %v545 = vadd.f32 %v544, 1.0
    %v546 = vrcp.pop %v545
    %v547 = vmul.f32 %v545, %v546
    %v548 = vsub.f32 1.0, %v547
    %v549 = vmul.f32 %v546, %v548
    %v550 = vadd.f32 %v546, %v549
    %vm551 = vweird.f32 %v545
    %vm552 = vweird.f32 %v546
    %vm553 = vmor %vm551, %vm552
    %v554 = vsel %vm553, %v546, %v550
    %v555 = vand.u32 2147483647, %v545
    %vm556 = vcmp.eq.f32.partialorder %v555, 8.507059e+37
    %v557 = vand.u32 %v545, 2147483648
    %v558 = vor.u32 1.1754944e-38, %v557
    %v559 = vsel %vm556, %v558, %v554
    %v560 = vmul.f32 1.0, %v559
    %v561 = vtanh.pop %v540
    %v562 = vmul.f32 %v560, %v506
    %564 = vrot.lane.b32.xlu0 %v561, 64
    %v565 = vpop.permute.xlu0 %564
    %v567 = vmul.f32 %v560, %v565
    %569 = vrot.lane.b32.xlu0 %v567, 32
    %v570 = vpop.permute.xlu0 %569
    %v572 = vadd.f32 %v562, %v570
    %v573 = vtanh.pop %v572
    %575 = vrot.lane.b32.xlu0 %v573, 64
    %v576 = vpop.permute.xlu0 %575
    %v578 = vmul.f32 %v560, %v576
    %580 = vrot.lane.b32.xlu0 %v578, 32
    %v581 = vpop.permute.xlu0 %580
    %v582 = vrot.slane %v89, 7
    %v583 = vrot.slane %v92, 6
    %v584 = vsel %vm175, %v583, %v582
    %v586 = vsel %vm184, %v581, 0
    %588 = vmatpush.msra.mxu0 0.0
    %589 = vmatpush.msra.mxu0 0.0
    %590 = vmatpush.msra.mxu0 0.0
    %591 = vmatpush.msra.mxu0 0.0
    %592 = vmatpush.msra.mxu0 0.0
    %593 = vmatpush.msra.mxu0 0.0
    %594 = vmatpush.msra.mxu0 0.0
    %595 = vmatpush.msra.mxu0 0.0
    %596 = vmatpush.msra.mxu0 0.0
    %597 = vmatpush.msra.mxu0 0.0
    %598 = vmatpush.msra.mxu0 0.0
    %599 = vmatpush.msra.mxu0 0.0
    %600 = vmatpush.msra.mxu0 %v97
    %601 = vmatpush.msra.mxu0 %v96
    %602 = vmatpush.msra.mxu0 %v95
    %603 = vmatpush.msra.mxu0 %v94
    %604 = vmatmul.f32.gmra.mxu0 %v586
    %v605 = vpop.f32.mrf.mxu0
    %v606 = vadd.f32 %v584, %v605
    %607 = vdwg.mxu0
    %v608 = vxor.u32 %v606, 2147483648
    %v609 = vmul.f32 %v608, 1.442695
    %v610 = vpow.pop %v609
    %v611 = vadd.f32 %v610, 1.0
    %v612 = vrcp.pop %v611
    %v613 = vmul.f32 %v611, %v612
    %v614 = vsub.f32 1.0, %v613
    %v615 = vmul.f32 %v612, %v614
    %v616 = vadd.f32 %v612, %v615
    %vm617 = vweird.f32 %v611
    %vm618 = vweird.f32 %v612
    %vm619 = vmor %vm617, %vm618
    %v620 = vsel %vm619, %v612, %v616
    %v621 = vand.u32 2147483647, %v611
    %vm622 = vcmp.eq.f32.partialorder %v621, 8.507059e+37
    %v623 = vand.u32 %v611, 2147483648
    %v624 = vor.u32 1.1754944e-38, %v623
    %v625 = vsel %vm622, %v624, %v620
    %v626 = vmul.f32 1.0, %v625
    %v627 = vtanh.pop %v606
    %v628 = vmul.f32 %v626, %v572
    %630 = vrot.lane.b32.xlu0 %v627, 64
    %v631 = vpop.permute.xlu0 %630
    %v633 = vmul.f32 %v626, %v631
    %635 = vrot.lane.b32.xlu0 %v633, 32
    %v636 = vpop.permute.xlu0 %635
    %v638 = vadd.f32 %v628, %v636
    %v639 = vtanh.pop %v638
    %641 = vrot.lane.b32.xlu0 %v639, 64
    %v642 = vpop.permute.xlu0 %641
    %v644 = vmul.f32 %v626, %v642
    %v645 = vld [vmem:[%s4] sm:$0xff]
    %v646 = vld [vmem:[%s4 + $0x8] sm:$0xff]
    %v647 = vld [vmem:[%s4 + $0x10] sm:$0xff]
    %v648 = vld [vmem:[%s4 + $0x18] sm:$0xff]
    %v649 = vld [vmem:[%s5] sm:$0x1]
    %v651 = vperm.slane %v649, 0
    %654 = vrot.lane.b32.xlu0 %v644, 32
    %v655 = vpop.permute.xlu0 %654
    %v656 = vsel %vm184, %v655, 0
    %658 = vmatpush.msra.mxu0 0.0
    %659 = vmatpush.msra.mxu0 0.0
    %660 = vmatpush.msra.mxu0 0.0
    %661 = vmatpush.msra.mxu0 0.0
    %662 = vmatpush.msra.mxu0 0.0
    %663 = vmatpush.msra.mxu0 0.0
    %664 = vmatpush.msra.mxu0 0.0
    %665 = vmatpush.msra.mxu0 0.0
    %666 = vmatpush.msra.mxu0 0.0
    %667 = vmatpush.msra.mxu0 0.0
    %668 = vmatpush.msra.mxu0 0.0
    %669 = vmatpush.msra.mxu0 0.0
    %670 = vmatpush.msra.mxu0 %v648
    %671 = vmatpush.msra.mxu0 %v647
    %672 = vmatpush.msra.mxu0 %v646
    %673 = vmatpush.msra.mxu0 %v645
    %674 = vmatmul.f32.gmra.mxu0 %v656
    %v675 = vpop.f32.mrf.mxu0
    %v676 = vadd.f32 %v651, %v675
    %677 = vdwg.mxu0
    %vm678 = vcmask 58368
    %v679 = vsel %vm678, %v676, -inf
    %680 = vmax.xlane.f32.xlu0 %v679
    %v681 = vpop.xlane.xlu0 %680
    %v682 = vsub.f32 %v676, %v681
    %v683 = vmul.f32 %v682, 1.442695
    %v684 = vpow.pop %v683
    %v685 = vsel %vm678, %v684, 0.0
    %686 = vadd.xlane.f32.xlu0 %v685
    %v687 = vpop.xlane.xlu0 %686
    %v688 = vrcp.pop %v687
    %v689 = vmul.f32 %v687, %v688
    %v690 = vsub.f32 1.0, %v689
    %v691 = vmul.f32 %v688, %v690
    %v692 = vadd.f32 %v688, %v691
    %vm693 = vweird.f32 %v687
    %vm694 = vweird.f32 %v688
    %vm695 = vmor %vm693, %vm694
    %v696 = vsel %vm695, %v688, %v692
    %v697 = vand.u32 2147483647, %v687
    %vm698 = vcmp.eq.f32.partialorder %v697, 8.507059e+37
    %v699 = vand.u32 %v687, 2147483648
    %v700 = vor.u32 1.1754944e-38, %v699
    %v701 = vsel %vm698, %v700, %v696
    %v702 = vmul.f32 %v684, %v701
    %703 = vst.msk [vmem:[#allocation7] sm:$0x3] %vm678, %v702
    // Predicated region
    $region34: #{tpu_custom_call.1} parent=1 // pred_check
      _
    $region35: #{tpu_custom_call.1} parent=1 // pred_check_branch
      %705 = sbr.rel (0) target = $region37
    $region36: #{tpu_custom_call.1} parent=1 // pred_region
      %707 = vsyncadd [#allocation4], 0
      %s709 = sshll.u32 [#allocation7], 4
      %s710 = int_to_ptr.vmem [resolvable:$true] %s709
      %s711 = sshll.u32 %s6, 4
      %s712 = int_to_ptr.hbm [resolvable:$true] %s711
      %714 = dma.vmem_to_hbm [thread:$0]  %s710, 32, %s712, [#allocation4]
    $region37: #{tpu_custom_call.1} parent=1 // pred_fallthru
      _
    // Predicated region
    $region38: #{tpu_custom_call.1} parent=1 // pred_check
      _
    $region39: #{tpu_custom_call.1} parent=1 // pred_check_branch
      %716 = sbr.rel (0) target = $region41
    $region40: #{tpu_custom_call.1} parent=1 // pred_region
      %718 = dma.done [#allocation4], 32
    $region41: #{tpu_custom_call.1} parent=1 // pred_fallthru
      _
    %719 = vsyncpa [#allocation3], 1
    %720 = vsyncpa [#allocation6], 1
    %721 = vsyncpa [#allocation4], 1

</llo_original>
